<compile_context>
chip_gen: v7x
topology: tpu7x:2x2x1
jax: 0.10.0
libtpu: 0.0.40
codegen_flags: <defaults>
</compile_context>

<pallas_src>
import math
from functools import partial

import jax
import jax.numpy as jnp
from jax import lax
from jax.experimental import pallas as pl
from jax.experimental.pallas import tpu as pltpu


_NEG_BIG = -1.0e30  # bias for padded vocab columns: exp() underflows to 0, never the max


def _round_up(n: int, m: int) -> int:
    return ((n + m - 1) // m) * m


def _cdiv(a: int, b: int) -> int:
    return (a + b - 1) // b


def _vmem_capacity_bytes() -> int:
    """Physical VMEM of the current chip; conservative 64 MiB fallback (v7x per-TC)."""
    try:
        cap = getattr(pltpu.get_tpu_info(), "vmem_capacity_bytes", None)
        if cap:
            return int(cap)
    except Exception:
        pass
    return 64 * 2**20


# ---------------------------------------------------------------------------
# Path 1: whole (padded) weight resident in VMEM, 1-D grid over row tiles.
# ---------------------------------------------------------------------------
def _dense_kernel(x_ref, w_ref, b_ref, o_ref):
    # x_ref: (TB, H)   w_ref: (Vp, H) PyTorch layout (trans-B matmul, no wrapper transpose)
    # b_ref: (1, Vp)   o_ref: (TB, Vp)
    logits = lax.dot_general(
        x_ref[...], w_ref[...],
        dimension_numbers=(((1,), (1,)), ((), ())),
        preferred_element_type=jnp.float32)
    logits = logits + b_ref[...].astype(jnp.float32)
    # Numerically stable log-softmax over the vocab (lane) axis, all in f32.
    m = jnp.max(logits, axis=-1, keepdims=True)
    s = logits - m
    lse = jnp.log(jnp.sum(jnp.exp(s), axis=-1, keepdims=True))
    o_ref[...] = (s - lse).astype(o_ref.dtype)


# ---------------------------------------------------------------------------
# Path 2: vocab-tiled, online logsumexp (weight never fully resident in VMEM).
# ---------------------------------------------------------------------------
def _vocab_tiled_kernel(x_ref, w_ref, b_ref, o_ref, logits_ref, m_ref, l_ref,
                        *, n_vt, tile_v):
    # x_ref: (TB, H)          w_ref: (tile_v, H)       b_ref: (1, 1, tile_v)
    # o_ref: (TB, Vp)  (resident across the vocab axis, written only at the last step)
    # logits_ref: (n_vt, TB, tile_v) f32 scratch; m_ref/l_ref: (TB, 1) f32 scratch
    j = pl.program_id(1)

    @pl.when(j == 0)
    def _init():
        m_ref[...] = jnp.full_like(m_ref, -jnp.inf)
        l_ref[...] = jnp.zeros_like(l_ref)

    logits = lax.dot_general(
        x_ref[...], w_ref[...],
        dimension_numbers=(((1,), (1,)), ((), ())),
        preferred_element_type=jnp.float32)
    logits = logits + b_ref[0].astype(jnp.float32)
    logits_ref[j] = logits                               # stash this vocab tile's logits

    # Online logsumexp accumulation over vocab tiles.
    m_prev = m_ref[...]
    m_new = jnp.maximum(m_prev, jnp.max(logits, axis=-1, keepdims=True))
    l_ref[...] = (l_ref[...] * jnp.exp(m_prev - m_new)
                  + jnp.sum(jnp.exp(logits - m_new), axis=-1, keepdims=True))
    m_ref[...] = m_new

    @pl.when(j == pl.num_programs(1) - 1)
    def _finalize():
        lse = m_ref[...] + jnp.log(l_ref[...])
        for jj in range(n_vt):                           # static unroll, lane-dense stores
            o_ref[:, jj * tile_v:(jj + 1) * tile_v] = (
                logits_ref[jj] - lse).astype(o_ref.dtype)


# ---------------------------------------------------------------------------
# Wrapper
# ---------------------------------------------------------------------------
def masked_log_model_forward(x, weight, bias, *, use_bf16_matmul=True,
                             out_dtype=None, tile_rows=None, vocab_tile=None,
                             force_vocab_tiling=False):
    """log_softmax(x @ weight.T + bias, axis=-1)  ==  MaskedLogModel.forward.

    x:      (..., H)
    weight: (V, H)   PyTorch nn.Linear layout (out_features, in_features)
    bias:   (V,)
    returns (..., V)
    """
    *lead, H = x.shape
    V, H_w = weight.shape
    assert H == H_w, "hidden dim mismatch between x and weight"
    rows = int(math.prod(lead)) if lead else 1

    if out_dtype is None:
        out_dtype = x.dtype          # pass jnp.bfloat16 to halve output HBM writeback
    out_dtype = jnp.dtype(out_dtype)

    x2 = x.reshape(rows, H)
    w = weight
    if use_bf16_matmul:
        # Precast MXU operands once here (not per grid step inside the kernel).
        if x2.dtype == jnp.float32:
            x2 = x2.astype(jnp.bfloat16)
        if w.dtype == jnp.float32:
            w = w.astype(jnp.bfloat16)

    xb = x2.dtype.itemsize
    wb = w.dtype.itemsize
    ob = out_dtype.itemsize

    headroom = 8 * 2**20
    budget = max(16 * 2**20, _vmem_capacity_bytes() - headroom)

    # ---- choose path: weight-resident (dense) vs vocab-tiled online logsumexp --------
    V128 = _round_up(V, 128)                              # lane-dense / unmasked stores
    w_res = V128 * H * wb                                 # single-buffered resident weight
    b_res = V128 * 4
    # per-row VMEM: double-buffered x / out tiles + f32 logits intermediate
    per_row_dense = 2 * H * xb + 2 * V128 * ob + V128 * 4
    dense_fits = (2 * w_res + b_res + 8 * per_row_dense) <= budget   # 2x: fallback-safe
    use_tiled = force_vocab_tiling or not dense_fits

    def pad_vocab(w_, b_, V_p):
        if V_p != V:
            w_ = jnp.pad(w_, ((0, V_p - V), (0, 0)))
            b_ = jnp.pad(b_, ((0, V_p - V),), constant_values=_NEG_BIG)
        return w_, b_

    if not use_tiled:
        # ---------------- dense (weight-resident) path --------------------------------
        V_p = V128
        w_p, b_p = pad_vocab(w, bias.astype(jnp.float32), V_p)
        b2 = b_p.reshape(1, V_p)

        if tile_rows is None:
            cap_rows = max(8, ((budget - 2 * w_res - b_res) // per_row_dense) // 8 * 8)
            tr = min(256, cap_rows)
            target_steps = 4 if rows >= 32 else 2          # >= 2 steps per TC on v7x
            tr = min(tr, max(8, _round_up(_cdiv(rows, target_steps), 8)))
            tile_rows_eff = max(8, tr)
        else:
            tile_rows_eff = max(8, _round_up(tile_rows, 8))

        rows_p = _round_up(rows, tile_rows_eff)
        x2p = jnp.pad(x2, ((0, rows_p - rows), (0, 0))) if rows_p != rows else x2

        need = 2 * w_res + b_res + tile_rows_eff * per_row_dense
        vmem_limit = int(min(budget, max(32 * 2**20, int(1.25 * need))))
        grid = (rows_p // tile_rows_eff,)

        cost = pl.CostEstimate(
            flops=2 * rows_p * H * V_p + 5 * rows_p * V_p,
            transcendentals=rows_p * V_p + rows_p,
            bytes_accessed=rows_p * H * xb + V_p * H * wb + V_p * 4 + rows_p * V_p * ob,
        )

        def dense_call(single_buffer_invariant):
            def inv_spec(shape, imap):
                # Grid-invariant block: the second pipeline buffer is pure waste.
                if single_buffer_invariant and hasattr(pl, "Buffered"):
                    return pl.BlockSpec(shape, imap, pipeline_mode=pl.Buffered(1))
                return pl.BlockSpec(shape, imap)

            return pl.pallas_call(
                _dense_kernel,
                out_shape=jax.ShapeDtypeStruct((rows_p, V_p), out_dtype),
                grid_spec=pltpu.PrefetchScalarGridSpec(
                    num_scalar_prefetch=0,
                    grid=grid,
                    in_specs=[
                        pl.BlockSpec((tile_rows_eff, H), lambda i: (i, 0)),   # x row tile
                        inv_spec((V_p, H), lambda i: (0, 0)),                 # whole weight
                        inv_spec((1, V_p), lambda i: (0, 0)),                 # bias row
                    ],
                    out_specs=pl.BlockSpec((tile_rows_eff, V_p), lambda i: (i, 0)),
                ),
                compiler_params=pltpu.CompilerParams(
                    dimension_semantics=("parallel",),
                    vmem_limit_bytes=vmem_limit,
                ),
                cost_estimate=cost,
            )(x2p, w_p, b2)

        try:
            out = dense_call(True)
        except Exception:
            # Older jax without pipeline_mode / Buffered(1): default double-buffering.
            out = dense_call(False)

    else:
        # ---------------- vocab-tiled (online logsumexp) path -------------------------
        if vocab_tile is None:
            tile_v = min(V128, 2048)
        else:
            tile_v = min(V128, max(128, _round_up(vocab_tile, 128)))
        V_p = _round_up(V, tile_v)
        n_vt = V_p // tile_v
        w_p, b_p = pad_vocab(w, bias.astype(jnp.float32), V_p)
        b3 = b_p.reshape(n_vt, 1, tile_v)

        w_tile_bytes = 2 * tile_v * H * wb
        b_tile_bytes = 2 * tile_v * 4
        # per-row VMEM: x/out double buffers + full-row f32 logits scratch + per-step temp
        per_row_t = 2 * H * xb + 2 * V_p * ob + V_p * 4 + tile_v * 4 + 8

        if tile_rows is None:
            cap_rows = max(8, ((budget - w_tile_bytes - b_tile_bytes) // per_row_t) // 8 * 8)
            tr = min(128, cap_rows)
            target_steps = 4 if rows >= 32 else 2
            tr = min(tr, max(8, _round_up(_cdiv(rows, target_steps), 8)))
            tile_rows_eff = max(8, tr)
        else:
            tile_rows_eff = max(8, _round_up(tile_rows, 8))

        rows_p = _round_up(rows, tile_rows_eff)
        x2p = jnp.pad(x2, ((0, rows_p - rows), (0, 0))) if rows_p != rows else x2

        need = w_tile_bytes + b_tile_bytes + tile_rows_eff * per_row_t
        vmem_limit = int(min(budget, max(32 * 2**20, int(1.25 * need))))

        cost = pl.CostEstimate(
            flops=2 * rows_p * H * V_p + 7 * rows_p * V_p,
            transcendentals=rows_p * V_p + rows_p * (n_vt + 1),
            bytes_accessed=rows_p * H * xb + V_p * H * wb + V_p * 4 + rows_p * V_p * ob,
        )

        out = pl.pallas_call(
            partial(_vocab_tiled_kernel, n_vt=n_vt, tile_v=tile_v),
            out_shape=jax.ShapeDtypeStruct((rows_p, V_p), out_dtype),
            grid_spec=pltpu.PrefetchScalarGridSpec(
                num_scalar_prefetch=0,
                grid=(rows_p // tile_rows_eff, n_vt),
                in_specs=[
                    pl.BlockSpec((tile_rows_eff, H), lambda i, j: (i, 0)),   # x row tile
                    pl.BlockSpec((tile_v, H), lambda i, j: (j, 0)),          # weight vocab tile
                    pl.BlockSpec((1, 1, tile_v), lambda i, j: (j, 0, 0)),    # bias vocab tile
                ],
                out_specs=pl.BlockSpec((tile_rows_eff, V_p), lambda i, j: (i, 0)),
                scratch_shapes=[
                    pltpu.VMEM((n_vt, tile_rows_eff, tile_v), jnp.float32),  # logits stash
                    pltpu.VMEM((tile_rows_eff, 1), jnp.float32),             # running max
                    pltpu.VMEM((tile_rows_eff, 1), jnp.float32),             # running sumexp
                ],
            ),
            compiler_params=pltpu.CompilerParams(
                dimension_semantics=("parallel", "arbitrary"),
                vmem_limit_bytes=vmem_limit,
            ),
            cost_estimate=cost,
        )(x2p, w_p, b3)

    out = out[:rows, :V]
    return out.reshape(*lead, V) if lead else out.reshape(V)


if __name__ == "__main__":
    # Small shapes consistent with the module: batch=2, seq=8, hidden=32, vocab=128.
    B, S, H, V = 2, 8, 32, 128
    key = jax.random.PRNGKey(0)
    kx, kw, kb = jax.random.split(key, 3)

    x = jax.random.normal(kx, (B, S, H), dtype=jnp.float32)
    bound = 1.0 / math.sqrt(H)  # nn.Linear default init range
    weight = jax.random.uniform(kw, (V, H), minval=-bound, maxval=bound, dtype=jnp.float32)
    bias = jax.random.uniform(kb, (V,), minval=-bound, maxval=bound, dtype=jnp.float32)

    # Dense (weight-resident) path.
    out = jax.block_until_ready(masked_log_model_forward(x, weight, bias))
    assert out.shape == (B, S, V)

    # Reference with matching bf16 matmul operands (f32 accumulation) — tight check.
    logits_bf = lax.dot_general(
        x.reshape(-1, H).astype(jnp.bfloat16), weight.astype(jnp.bfloat16),
        dimension_numbers=(((1,), (1,)), ((), ())),
        preferred_element_type=jnp.float32) + bias
    ref_bf = jax.nn.log_softmax(logits_bf, axis=-1).reshape(B, S, V)
    assert jnp.allclose(out, ref_bf, atol=1e-4, rtol=1e-4), "dense path vs bf16 reference"

    # Loose check against full-f32 math (difference is bf16 rounding of the matmul only).
    ref_f32 = jax.nn.log_softmax(jnp.einsum("bsh,vh->bsv", x, weight) + bias, axis=-1)
    assert jnp.allclose(out, ref_f32, atol=5e-2, rtol=5e-2), "dense path vs f32 reference"

    # Exercise the vocab-tiled online-logsumexp path at a small size (forced).
    V2 = 384
    kw2, kb2 = jax.random.split(kb, 2)
    weight2 = jax.random.uniform(kw2, (V2, H), minval=-bound, maxval=bound, dtype=jnp.float32)
    bias2 = jax.random.uniform(kb2, (V2,), minval=-bound, maxval=bound, dtype=jnp.float32)
    out2 = jax.block_until_ready(
        masked_log_model_forward(x, weight2, bias2, force_vocab_tiling=True, vocab_tile=128))
    assert out2.shape == (B, S, V2)
    logits2_bf = lax.dot_general(
        x.reshape(-1, H).astype(jnp.bfloat16), weight2.astype(jnp.bfloat16),
        dimension_numbers=(((1,), (1,)), ((), ())),
        preferred_element_type=jnp.float32) + bias2
    ref2_bf = jax.nn.log_softmax(logits2_bf, axis=-1).reshape(B, S, V2)
    assert jnp.allclose(out2, ref2_bf, atol=2e-3, rtol=2e-3), "tiled path vs bf16 reference"
    ref2_f32 = jax.nn.log_softmax(jnp.einsum("bsh,vh->bsv", x, weight2) + bias2, axis=-1)
    assert jnp.allclose(out2, ref2_f32, atol=5e-2, rtol=5e-2), "tiled path vs f32 reference"

    print("KERNEL_OK")
</pallas_src>

<mosaic_0001>
module attributes {stable_mosaic.version = 11 : i64} {
  func.func @_dense_kernel(%arg0: i32, %arg1: memref<8x32xbf16, #tpu.memory_space<vmem>>, %arg2: memref<128x32xbf16, #tpu.memory_space<vmem>>, %arg3: memref<1x128xf32, #tpu.memory_space<vmem>>, %arg4: memref<8x128xf32, #tpu.memory_space<vmem>>) attributes {dimension_semantics = [#tpu.dimension_semantics<parallel>], iteration_bounds = array<i64: 2>, scalar_prefetch = 0 : i64, scratch_operands = 0 : i64, tpu.core_type = #tpu.core_type<tc>, window_params = [{transform_indices = @transform_0, window_bounds = array<i64: 8, 32>}, {pipeline_mode = #tpu.pipeline_mode<synchronous>, transform_indices = @transform_1, window_bounds = array<i64: 128, 32>}, {pipeline_mode = #tpu.pipeline_mode<synchronous>, transform_indices = @transform_2, window_bounds = array<i64: 1, 128>}, {transform_indices = @transform_3, window_bounds = array<i64: 8, 128>}]} {
    %c0 = arith.constant 0 : index
    %c0_0 = arith.constant 0 : index
    %0 = vector.load %arg1[%c0, %c0_0] : memref<8x32xbf16, #tpu.memory_space<vmem>>, vector<8x32xbf16>
    %c0_1 = arith.constant 0 : index
    %c0_2 = arith.constant 0 : index
    %1 = vector.load %arg2[%c0_1, %c0_2] : memref<128x32xbf16, #tpu.memory_space<vmem>>, vector<128x32xbf16>
    %cst = arith.constant dense<0.000000e+00> : vector<8x128xf32>
    %2 = tpu.matmul %0, %1, %cst {dimension_numbers = #tpu.dot_dimension_numbers<[1], [1], [0], [0], [0, 0, 1, 0], [], []>} : vector<8x32xbf16>, vector<128x32xbf16>, vector<8x128xf32> -> vector<8x128xf32>
    %c0_3 = arith.constant 0 : index
    %c0_4 = arith.constant 0 : index
    %3 = vector.load %arg3[%c0_3, %c0_4] : memref<1x128xf32, #tpu.memory_space<vmem>>, vector<1x128xf32>
    %4 = vector.broadcast %3 : vector<1x128xf32> to vector<8x128xf32>
    %5 = arith.addf %2, %4 : vector<8x128xf32>
    %cst_5 = arith.constant dense<0xFF800000> : vector<8xf32>
    %6 = vector.multi_reduction <maximumf>, %5, %cst_5 [1] : vector<8x128xf32> to vector<8xf32>
    %7 = vector.shape_cast %6 : vector<8xf32> to vector<8x1xf32>
    %8 = vector.broadcast %7 : vector<8x1xf32> to vector<8x128xf32>
    %9 = arith.subf %5, %8 : vector<8x128xf32>
    %10 = math.exp %9 : vector<8x128xf32>
    %cst_6 = arith.constant dense<0.000000e+00> : vector<8xf32>
    %11 = vector.multi_reduction <add>, %10, %cst_6 [1] : vector<8x128xf32> to vector<8xf32>
    %12 = vector.shape_cast %11 : vector<8xf32> to vector<8x1xf32>
    %13 = math.log %12 : vector<8x1xf32>
    %14 = vector.broadcast %13 : vector<8x1xf32> to vector<8x128xf32>
    %15 = arith.subf %9, %14 : vector<8x128xf32>
    %c0_7 = arith.constant 0 : index
    %c0_8 = arith.constant 0 : index
    %16 = vector.load %arg4[%c0_7, %c0_8] : memref<8x128xf32, #tpu.memory_space<vmem>>, vector<8x128xf32>
    tpu.vector_store %arg4[%c0_7, %c0_8], %15 {strides = array<i32>} : memref<8x128xf32, #tpu.memory_space<vmem>>, vector<8x128xf32>,
    return
  }
  func.func @transform_0(%arg0: i32) -> (i32, i32) {
    %c0_i32 = arith.constant 0 : i32
    %c0_i32_0 = arith.constant 0 : i32
    return %arg0, %c0_i32 : i32, i32
  }
  func.func @transform_1(%arg0: i32) -> (i32, i32) {
    %c0_i32 = arith.constant 0 : i32
    %c0_i32_0 = arith.constant 0 : i32
    %c0_i32_1 = arith.constant 0 : i32
    return %c0_i32, %c0_i32_0 : i32, i32
  }
  func.func @transform_2(%arg0: i32) -> (i32, i32) {
    %c0_i32 = arith.constant 0 : i32
    %c0_i32_0 = arith.constant 0 : i32
    %c0_i32_1 = arith.constant 0 : i32
    return %c0_i32, %c0_i32_0 : i32, i32
  }
  func.func @transform_3(%arg0: i32) -> (i32, i32) {
    %c0_i32 = arith.constant 0 : i32
    %c0_i32_0 = arith.constant 0 : i32
    return %arg0, %c0_i32 : i32, i32
  }
}

module attributes {stable_mosaic.version = 11 : i64} {
  func.func @_dense_kernel(%arg0: i32, %arg1: memref<8x32xbf16, #tpu.memory_space<vmem>>, %arg2: memref<128x32xbf16, #tpu.memory_space<vmem>>, %arg3: memref<1x128xf32, #tpu.memory_space<vmem>>, %arg4: memref<8x128xf32, #tpu.memory_space<vmem>>) attributes {dimension_semantics = [#tpu.dimension_semantics<parallel>], iteration_bounds = array<i64: 2>, scalar_prefetch = 0 : i64, scratch_operands = 0 : i64, tpu.core_type = #tpu.core_type<tc>, window_params = [{transform_indices = @transform_0, window_bounds = array<i64: 8, 32>}, {pipeline_mode = #tpu.pipeline_mode<synchronous>, transform_indices = @transform_1, window_bounds = array<i64: 128, 32>}, {pipeline_mode = #tpu.pipeline_mode<synchronous>, transform_indices = @transform_2, window_bounds = array<i64: 1, 128>}, {transform_indices = @transform_3, window_bounds = array<i64: 8, 128>}]} {
    %c0 = arith.constant 0 : index
    %c0_0 = arith.constant 0 : index
    %0 = vector.load %arg1[%c0, %c0_0] : memref<8x32xbf16, #tpu.memory_space<vmem>>, vector<8x32xbf16>
    %c0_1 = arith.constant 0 : index
    %c0_2 = arith.constant 0 : index
    %1 = vector.load %arg2[%c0_1, %c0_2] : memref<128x32xbf16, #tpu.memory_space<vmem>>, vector<128x32xbf16>
    %cst = arith.constant dense<0.000000e+00> : vector<8x128xf32>
    %2 = tpu.matmul %0, %1, %cst {dimension_numbers = #tpu.dot_dimension_numbers<[1], [1], [0], [0], [0, 0, 1, 0], [], []>} : vector<8x32xbf16>, vector<128x32xbf16>, vector<8x128xf32> -> vector<8x128xf32>
    %c0_3 = arith.constant 0 : index
    %c0_4 = arith.constant 0 : index
    %3 = vector.load %arg3[%c0_3, %c0_4] : memref<1x128xf32, #tpu.memory_space<vmem>>, vector<1x128xf32>
    %4 = vector.broadcast %3 : vector<1x128xf32> to vector<8x128xf32>
    %5 = arith.addf %2, %4 : vector<8x128xf32>
    %cst_5 = arith.constant dense<0xFF800000> : vector<8xf32>
    %6 = vector.multi_reduction <maximumf>, %5, %cst_5 [1] : vector<8x128xf32> to vector<8xf32>
    %7 = vector.shape_cast %6 : vector<8xf32> to vector<8x1xf32>
    %8 = vector.broadcast %7 : vector<8x1xf32> to vector<8x128xf32>
    %9 = arith.subf %5, %8 : vector<8x128xf32>
    %10 = math.exp %9 : vector<8x128xf32>
    %cst_6 = arith.constant dense<0.000000e+00> : vector<8xf32>
    %11 = vector.multi_reduction <add>, %10, %cst_6 [1] : vector<8x128xf32> to vector<8xf32>
    %12 = vector.shape_cast %11 : vector<8xf32> to vector<8x1xf32>
    %13 = math.log %12 : vector<8x1xf32>
    %14 = vector.broadcast %13 : vector<8x1xf32> to vector<8x128xf32>
    %15 = arith.subf %9, %14 : vector<8x128xf32>
    %c0_7 = arith.constant 0 : index
    %c0_8 = arith.constant 0 : index
    %16 = vector.load %arg4[%c0_7, %c0_8] : memref<8x128xf32, #tpu.memory_space<vmem>>, vector<8x128xf32>
    tpu.vector_store %arg4[%c0_7, %c0_8], %15 {strides = array<i32>} : memref<8x128xf32, #tpu.memory_space<vmem>>, vector<8x128xf32>,
    return
  }
  func.func @transform_0(%arg0: i32) -> (i32, i32) {
    %c0_i32 = arith.constant 0 : i32
    %c0_i32_0 = arith.constant 0 : i32
    return %arg0, %c0_i32 : i32, i32
  }
  func.func @transform_1(%arg0: i32) -> (i32, i32) {
    %c0_i32 = arith.constant 0 : i32
    %c0_i32_0 = arith.constant 0 : i32
    %c0_i32_1 = arith.constant 0 : i32
    return %c0_i32, %c0_i32_0 : i32, i32
  }
  func.func @transform_2(%arg0: i32) -> (i32, i32) {
    %c0_i32 = arith.constant 0 : i32
    %c0_i32_0 = arith.constant 0 : i32
    %c0_i32_1 = arith.constant 0 : i32
    return %c0_i32, %c0_i32_0 : i32, i32
  }
  func.func @transform_3(%arg0: i32) -> (i32, i32) {
    %c0_i32 = arith.constant 0 : i32
    %c0_i32_0 = arith.constant 0 : i32
    return %arg0, %c0_i32 : i32, i32
  }
}

</mosaic_0001>

<llo_original>
// kernel: tpu_custom_call.1
$region0: #{tpu_custom_call.1}
  #allocation0 [shape = 'u32[]', space=smem, size = 0x4, offset = 0x4, fixed_abs, tag = 'smem constant byte address 0x4 - core index']
  #allocation1 [shape = 'u32[144,128]{1,0:T(1,128)}', space=vmem, size = 0x12000, scoped, tag = 'internal scratch']
  %s0 = inlined_call_operand.vmem [shape: bf16[16,32], index: 0, kind: input, shape index: {}]
  %s1 = inlined_call_operand.vmem [shape: bf16[128,32], index: 1, kind: input, shape index: {}]
  %s2 = inlined_call_operand.vmem [shape: f32[1,128], index: 2, kind: input, shape index: {}]
  %s3 = inlined_call_operand.hbm [shape: f32[16,128], index: 3, kind: output, shape index: {}]
  %s4 = sld [smem:[#allocation0]]
  $region45: #{tpu_custom_call.1} parent=0
    _
  %s6 = ssub.s32 1, %s4
  %s7 = scalar_select 0, %s6, %s4
  $region1: #{tpu_custom_call.1} parent=0
    #allocation2 [shape = 'u8[8192]{0}', space=vmem, size = 0x2000, scoped, tag = 'output window, operand 0']
    #allocation3 [shape = 's32[2]{0}', space=sflag, size = 0x8, scoped, tag = 'scoped memory for tpu_custom_call.1']
    %8 = vsyncpa [#allocation3], 0
    %s9 = scalar_lea.sflag [#allocation3], 1
    %10 = vsyncpa %s9, 0
    loop: start=0, step=1, limit=4
    $region2: #{tpu_custom_call.1} parent=1 // loop_pre_header
      _
    $region3: #{tpu_custom_call.1} parent=1 // loop_header
      %s12 = sphi 0, %s16
      %p13 = scmp.ge.s32.totalorder %s12, 4
      %s22 = sphi 0, %s24
      %s25 = sphi 0, %s22
      %s26 = sphi 0, %s25
      %s42 = sphi 0, %s26
      %s46 = sphi 0, %s46
      %s48 = sphi 0, %s46
      %s49 = sphi 0, %s48
      %s63 = sphi 0, %s49
      %s67 = sphi 0, %s67
      %s69 = sphi 0, %s67
      %s70 = sphi 0, %s69
      %s84 = sphi 0, %s70
      %s90 = sphi 0, %s92
      %s93 = sphi 0, %s90
      %s94 = sphi 0, %s93
      %s110 = sphi 0, %s94
    $region4: #{tpu_custom_call.1} parent=1 // loop_header_branch
      %15 = sbr.rel (%p13) target = $region8
    $region5: #{tpu_custom_call.1} parent=1 // loop_body
      %s17 = ssub.s32 %s12, 1
      %s18 = ssub.s32 %s12, 2
      %s19 = sadd.s32 %s12, 1
      %s20 = ssub.s32 %s12, %s19
      %p21 = scmp.eq.s32.totalorder %s20, 0
      %s23 = sadd.s32 %s22, 1
      %s24 = scalar_select %p21, %s22, %s23
      %p27 = pneg %p21
      %p28 = scmp.eq.s32.totalorder %s12, 1
      %p29 = por %p27, %p28
      %p30 = scmp.ne.s32.totalorder %s22, %s25
      %p31 = scmp.eq.s32.totalorder %s12, 0
      %p32 = por %p30, %p31
      %p33 = scmp.ne.s32.totalorder %s22, %s25
      %p34 = scmp.eq.s32.totalorder %s17, 1
      %p35 = por %p33, %p34
      %p36 = scmp.ne.s32.totalorder %s25, %s26
      %p37 = scmp.eq.s32.totalorder %s17, 0
      %p38 = por %p36, %p37
      %p39 = scmp.ne.s32.totalorder %s25, %s26
      %p40 = scmp.eq.s32.totalorder %s18, 1
      %p41 = por %p39, %p40
      %p43 = scmp.ne.s32.totalorder %s26, %s42
      %p44 = scmp.eq.s32.totalorder %s18, 0
      %p45 = por %p43, %p44
      %s47 = sadd.s32 %s46, 1
      %p50 = scmp.eq.s32.totalorder %s12, 1
      %p51 = scmp.ne.s32.totalorder %s46, %s48
      %p52 = scmp.eq.s32.totalorder %s12, 0
      %p53 = por %p51, %p52
      %p54 = scmp.ne.s32.totalorder %s46, %s48
      %p55 = scmp.eq.s32.totalorder %s17, 1
      %p56 = por %p54, %p55
      %p57 = scmp.ne.s32.totalorder %s48, %s49
      %p58 = scmp.eq.s32.totalorder %s17, 0
      %p59 = por %p57, %p58
      %p60 = scmp.ne.s32.totalorder %s48, %s49
      %p61 = scmp.eq.s32.totalorder %s18, 1
      %p62 = por %p60, %p61
      %p64 = scmp.ne.s32.totalorder %s49, %s63
      %p65 = scmp.eq.s32.totalorder %s18, 0
      %p66 = por %p64, %p65
      %s68 = sadd.s32 %s67, 1
      %p71 = scmp.eq.s32.totalorder %s12, 1
      %p72 = scmp.ne.s32.totalorder %s67, %s69
      %p73 = scmp.eq.s32.totalorder %s12, 0
      %p74 = por %p72, %p73
      %p75 = scmp.ne.s32.totalorder %s67, %s69
      %p76 = scmp.eq.s32.totalorder %s17, 1
      %p77 = por %p75, %p76
      %p78 = scmp.ne.s32.totalorder %s69, %s70
      %p79 = scmp.eq.s32.totalorder %s17, 0
      %p80 = por %p78, %p79
      %p81 = scmp.ne.s32.totalorder %s69, %s70
      %p82 = scmp.eq.s32.totalorder %s18, 1
      %p83 = por %p81, %p82
      %p85 = scmp.ne.s32.totalorder %s70, %s84
      %p86 = scmp.eq.s32.totalorder %s18, 0
      %p87 = por %p85, %p86
      %s88 = ssub.s32 %s12, %s19
      %p89 = scmp.eq.s32.totalorder %s88, 0
      %s91 = sadd.s32 %s90, 1
      %s92 = scalar_select %p89, %s90, %s91
      %p95 = pneg %p89
      %p96 = scmp.eq.s32.totalorder %s12, 1
      %p97 = por %p95, %p96
      %p98 = scmp.ne.s32.totalorder %s90, %s93
      %p99 = scmp.eq.s32.totalorder %s12, 0
      %p100 = por %p98, %p99
      %p101 = scmp.ne.s32.totalorder %s90, %s93
      %p102 = scmp.eq.s32.totalorder %s17, 1
      %p103 = por %p101, %p102
      %p104 = scmp.ne.s32.totalorder %s93, %s94
      %p105 = scmp.eq.s32.totalorder %s17, 0
      %p106 = por %p104, %p105
      %p107 = scmp.ne.s32.totalorder %s93, %s94
      %p108 = scmp.eq.s32.totalorder %s18, 1
      %p109 = por %p107, %p108
      %p111 = scmp.ne.s32.totalorder %s94, %s110
      %p112 = scmp.eq.s32.totalorder %s18, 0
      %p113 = por %p111, %p112
      %p114 = scmp.le.s32.totalorder 1, %s12
      %p115 = scmp.lt.s32.totalorder %s12, 3
      %p116 = pnand %p114, %p115
      %p117 = pneg %p116
      // Predicated region
      $region9: #{tpu_custom_call.1} parent=5 // pred_check
        _
      $region10: #{tpu_custom_call.1} parent=5 // pred_check_branch
        %119 = sbr.rel (%p116) target = $region12
      $region11: #{tpu_custom_call.1} parent=5 // pred_region
        %s120 = ssub.s32 %s12, 1
        // Predicated region
        $region13: #{tpu_custom_call.1} parent=11 // pred_check
          %p121 = pneg %p59
        $region14: #{tpu_custom_call.1} parent=11 // pred_check_branch
          %123 = sbr.rel (%p121) target = $region16
        $region15: #{tpu_custom_call.1} parent=11 // pred_region
          _
        $region16: #{tpu_custom_call.1} parent=11 // pred_fallthru
          _
        // Predicated region
        $region17: #{tpu_custom_call.1} parent=11 // pred_check
          %p124 = pneg %p80
        $region18: #{tpu_custom_call.1} parent=11 // pred_check_branch
          %126 = sbr.rel (%p124) target = $region20
        $region19: #{tpu_custom_call.1} parent=11 // pred_region
          _
        $region20: #{tpu_custom_call.1} parent=11 // pred_fallthru
          _
      $region12: #{tpu_custom_call.1} parent=5 // pred_fallthru
        _
      %p127 = scmp.lt.s32.totalorder %s12, 2
      // Predicated region
      $region21: #{tpu_custom_call.1} parent=5 // pred_check
        %p128 = pneg %p127
      $region22: #{tpu_custom_call.1} parent=5 // pred_check_branch
        %130 = sbr.rel (%p128) target = $region24
      $region23: #{tpu_custom_call.1} parent=5 // pred_region
        // Predicated region
        $region25: #{tpu_custom_call.1} parent=23 // pred_check
          %p131 = pneg %p32
        $region26: #{tpu_custom_call.1} parent=23 // pred_check_branch
          %133 = sbr.rel (%p131) target = $region28
        $region27: #{tpu_custom_call.1} parent=23 // pred_region
          %p134 = scmp.lt.s32.totalorder %s12, 1
          %s135 = scalar_select %p134, %s12, 1
          %s136 = smul.addr %s135, 4
          %s137 = scalar_lea.vmem %s0, %s136
        $region28: #{tpu_custom_call.1} parent=23 // pred_fallthru
          _
      $region24: #{tpu_custom_call.1} parent=5 // pred_fallthru
        _
      %p138 = scmp.le.s32.totalorder 1, %s12
      %p139 = scmp.lt.s32.totalorder %s12, 3
      %p140 = pnand %p138, %p139
      %p141 = pneg %p140
      // Predicated region
      $region29: #{tpu_custom_call.1} parent=5 // pred_check
        _
      $region30: #{tpu_custom_call.1} parent=5 // pred_check_branch
        %143 = sbr.rel (%p140) target = $region32
      $region31: #{tpu_custom_call.1} parent=5 // pred_region
        %s144 = ssub.s32 %s12, 1
        %p145 = scmp.lt.s32.totalorder %s17, 1
        %s146 = scalar_select %p145, %s17, 1
        %s147 = smul.addr %s146, 4
        %s148 = scalar_lea.vmem %s0, %s147
        %p149 = pneg %p38
        %p150 = pneg %p35
        %p151 = pneg %p59
        %p152 = pneg %p56
        %p153 = pneg %p80
        %p154 = pneg %p77
        %p155 = pneg %p106
        %p156 = pneg %p103
        %s157 = sand.u32 %s93, 1
        %s158 = scalar_lea.sflag [#allocation3], %s157
        %s159 = sand.u32 %s93, 1
        %s160 = smul.addr %s159, 8
        %s161 = scalar_lea.vmem [#allocation2], %s160
        %p162 = scmp.lt.s32.totalorder %s17, 1
        %s163 = scalar_select %p162, %s17, 1
        %s164 = smul.addr %s163, 4
        %s165 = scalar_lea.vmem %s0, %s164
        %v167 = vld [vmem:[%s165] sm:$0xf]
        %v168 = vld [vmem:[%s1] sm:$0xf]
        %v169 = vld [vmem:[%s1 + $0x4] sm:$0xf]
        %v170 = vld [vmem:[%s1 + $0x8] sm:$0xf]
        %v171 = vld [vmem:[%s1 + $0xc] sm:$0xf]
        %v172 = vld [vmem:[%s1 + $0x10] sm:$0xf]
        %v173 = vld [vmem:[%s1 + $0x14] sm:$0xf]
        %v174 = vld [vmem:[%s1 + $0x18] sm:$0xf]
        %v175 = vld [vmem:[%s1 + $0x1c] sm:$0xf]
        %v176 = vld [vmem:[%s1 + $0x20] sm:$0xf]
        %v177 = vld [vmem:[%s1 + $0x24] sm:$0xf]
        %v178 = vld [vmem:[%s1 + $0x28] sm:$0xf]
        %v179 = vld [vmem:[%s1 + $0x2c] sm:$0xf]
        %v180 = vld [vmem:[%s1 + $0x30] sm:$0xf]
        %v181 = vld [vmem:[%s1 + $0x34] sm:$0xf]
        %v182 = vld [vmem:[%s1 + $0x38] sm:$0xf]
        %v183 = vld [vmem:[%s1 + $0x3c] sm:$0xf]
        %v184 = vld [vmem:[%s2] sm:$0x1]
        %v186 = vlaneseq
        %v187 = vshrl.u32 %v186, 7
        %v188 = vsub.s32 0, %v187
        %v189 = vrot.slane %v184, %v188
        %v207 = vunpack.c.l.b16 %v168
        %v208 = vunpack.c.l.b16 %v169
        %v209 = vunpack.c.l.b16 %v170
        %v210 = vunpack.c.l.b16 %v171
        %v211 = vunpack.c.l.b16 %v172
        %v212 = vunpack.c.l.b16 %v173
        %v213 = vunpack.c.l.b16 %v174
        %v214 = vunpack.c.l.b16 %v175
        %v215 = vunpack.c.l.b16 %v176
        %v216 = vunpack.c.l.b16 %v177
        %v217 = vunpack.c.l.b16 %v178
        %v218 = vunpack.c.l.b16 %v179
        %v219 = vunpack.c.l.b16 %v180
        %v220 = vunpack.c.l.b16 %v181
        %v221 = vunpack.c.l.b16 %v182
        %v222 = vunpack.c.l.b16 %v183
        %v223 = vpack.c.b16 %v208, %v207
        %v224 = vpack.c.b16 %v210, %v209
        %v225 = vpack.c.b16 %v212, %v211
        %v226 = vpack.c.b16 %v214, %v213
        %v227 = vpack.c.b16 %v216, %v215
        %v228 = vpack.c.b16 %v218, %v217
        %v229 = vpack.c.b16 %v220, %v219
        %v230 = vpack.c.b16 %v222, %v221
        %vm231 = vcmask 261120
        %v233 = vsel %vm231, %v167, 0
        %v236 = vsel %vm231, %v223, 0
        %v239 = vsel %vm231, %v224, 0
        %v242 = vsel %vm231, %v225, 0
        %v245 = vsel %vm231, %v226, 0
        %v248 = vsel %vm231, %v227, 0
        %v251 = vsel %vm231, %v228, 0
        %v254 = vsel %vm231, %v229, 0
        %v257 = vsel %vm231, %v230, 0
        %259 = vmatprep.subr.bf16.mxu0 0
        %260 = vmatpush1.bf16.xpose.msra.mxu0 %v236
        %261 = vmatprep.subr.bf16.mxu0 0
        %262 = vmatpush1.bf16.xpose.msra.mxu0 %v239
        %263 = vmatprep.subr.bf16.mxu0 0
        %264 = vmatpush1.bf16.xpose.msra.mxu0 %v242
        %265 = vmatprep.subr.bf16.mxu0 0
        %266 = vmatpush1.bf16.xpose.msra.mxu0 %v245
        %267 = vmatprep.subr.bf16.mxu0 0
        %268 = vmatpush1.bf16.xpose.msra.mxu0 %v248
        %269 = vmatprep.subr.bf16.mxu0 0
        %270 = vmatpush1.bf16.xpose.msra.mxu0 %v251
        %271 = vmatprep.subr.bf16.mxu0 0
        %272 = vmatpush1.bf16.xpose.msra.mxu0 %v254
        %273 = vmatprep.subr.bf16.mxu0 0
        %274 = vmatpush1.bf16.xpose.msra.mxu0 %v257
        %275 = vmatprep.subr.bf16.mxu0 0
        %276 = vmatpush1.bf16.xpose.msra.mxu0 0
        %277 = vmatprep.subr.bf16.mxu0 0
        %278 = vmatpush1.bf16.xpose.msra.mxu0 0
        %279 = vmatprep.subr.bf16.mxu0 0
        %280 = vmatpush1.bf16.xpose.msra.mxu0 0
        %281 = vmatprep.subr.bf16.mxu0 0
        %282 = vmatpush1.bf16.xpose.msra.mxu0 0
        %283 = vmatprep.subr.bf16.mxu0 0
        %284 = vmatpush1.bf16.xpose.msra.mxu0 0
        %285 = vmatprep.subr.bf16.mxu0 0
        %286 = vmatpush1.bf16.xpose.msra.mxu0 0
        %287 = vmatprep.subr.bf16.mxu0 0
        %288 = vmatpush1.bf16.xpose.msra.mxu0 0
        %289 = vmatprep.subr.bf16.mxu0 0
        %290 = vmatpush1.bf16.xpose.msra.mxu0 0
        %291 = vmatprep.mubr.bf16.mxu0 0
        %292 = vmatmul.mubr.bf16.gmra.mrb[0].mxu0 %v233
        %v293 = vpop.f32.mrb[0].mxu0
        %v294 = vadd.f32 %v189, %v293
        %v295 = vpop.f32.mrb[0].mxu0
        %v296 = vpop.f32.mrb[0].mxu0
        %v297 = vpop.f32.mrb[0].mxu0
        %298 = vdwg.mxu0
        %299 = vmax.xlane.f32.xlu0 %v294
        %v300 = vpop.xlane.xlu0 %299
        %v301 = vsub.f32 %v294, %v300
        %v302 = vmul.f32 %v301, 1.442695
        %v303 = vpow.pop %v302
        %304 = vadd.xlane.f32.xlu0 %v303
        %v305 = vpop.xlane.xlu0 %304
        %v306 = vlog2.pop %v305
        %v307 = vmul.f32 %v306, 0.6931472
        %v308 = vsub.f32 %v301, %v307
        %309 = vst [vmem:[%s161] sm:$0xff] %v308
        %s310 = sand.u32 %s93, 1
        %s311 = scalar_lea.sflag [#allocation3], %s310
        %s312 = sand.u32 %s93, 1
        %s313 = smul.addr %s312, 8
        %s314 = scalar_lea.vmem [#allocation2], %s313
        // Predicated region
        $region33: #{tpu_custom_call.1} parent=31 // pred_check
          %p315 = pneg %p103
        $region34: #{tpu_custom_call.1} parent=31 // pred_check_branch
          %317 = sbr.rel (%p315) target = $region36
        $region35: #{tpu_custom_call.1} parent=31 // pred_region
          %s319 = ssub.s32 128, 128
          %320 = vsyncadd %s311, %s319
          %s321 = smul.addr %s17, 128
          %s322 = scalar_lea.hbm %s3, %s321
          %s324 = sshll.u32 %s314, 4
          %s325 = int_to_ptr.vmem [resolvable:$true] %s324
          %327 = dma.vmem_to_hbm [thread:$0]  %s325, 128, %s322, %s311
        $region36: #{tpu_custom_call.1} parent=31 // pred_fallthru
          _
      $region32: #{tpu_custom_call.1} parent=5 // pred_fallthru
        _
      %p328 = scmp.le.s32.totalorder 2, %s12
      // Predicated region
      $region37: #{tpu_custom_call.1} parent=5 // pred_check
        %p329 = pneg %p328
      $region38: #{tpu_custom_call.1} parent=5 // pred_check_branch
        %331 = sbr.rel (%p329) target = $region40
      $region39: #{tpu_custom_call.1} parent=5 // pred_region
        %s332 = ssub.s32 %s12, 2
        // Predicated region
        $region41: #{tpu_custom_call.1} parent=39 // pred_check
          %p333 = pneg %p109
        $region42: #{tpu_custom_call.1} parent=39 // pred_check_branch
          %335 = sbr.rel (%p333) target = $region44
        $region43: #{tpu_custom_call.1} parent=39 // pred_region
          %s336 = sand.u32 %s94, 1
          %s337 = scalar_lea.sflag [#allocation3], %s336
          %s338 = sand.u32 %s94, 1
          %s339 = smul.addr %s338, 8
          %s340 = scalar_lea.vmem [#allocation2], %s339
          %341 = dma.done %s337, 128
        $region44: #{tpu_custom_call.1} parent=39 // pred_fallthru
          _
      $region40: #{tpu_custom_call.1} parent=5 // pred_fallthru
        _
    $region6: #{tpu_custom_call.1} parent=1 // loop_footer
      %s16 = sadd.s32 1, %s12
    $region7: #{tpu_custom_call.1} parent=1 // loop_footer_branch
      %11 = sbr.rel target = $region3
    $region8: #{tpu_custom_call.1} parent=1 // loop_exit
      _
    %342 = vsyncpa [#allocation3], 1
    %s343 = scalar_lea.sflag [#allocation3], 1
    %344 = vsyncpa %s343, 1

// kernel: tpu_custom_call.1
$region0: #{tpu_custom_call.1}
  #allocation0 [shape = 'u32[]', space=smem, size = 0x4, offset = 0x4, fixed_abs, tag = 'smem constant byte address 0x4 - core index']
  #allocation1 [shape = 'u32[144,128]{1,0:T(1,128)}', space=vmem, size = 0x12000, scoped, tag = 'internal scratch']
  %s0 = inlined_call_operand.vmem [shape: bf16[16,32], index: 0, kind: input, shape index: {}]
  %s1 = inlined_call_operand.vmem [shape: bf16[128,32], index: 1, kind: input, shape index: {}]
  %s2 = inlined_call_operand.vmem [shape: f32[1,128], index: 2, kind: input, shape index: {}]
  %s3 = inlined_call_operand.hbm [shape: f32[16,128], index: 3, kind: output, shape index: {}]
  %s4 = sld [smem:[#allocation0]]
  $region45: #{tpu_custom_call.1} parent=0
    _
  %s6 = ssub.s32 1, %s4
  %s7 = scalar_select 0, %s6, %s4
  $region1: #{tpu_custom_call.1} parent=0
    #allocation2 [shape = 'u8[8192]{0}', space=vmem, size = 0x2000, scoped, tag = 'output window, operand 0']
    #allocation3 [shape = 's32[2]{0}', space=sflag, size = 0x8, scoped, tag = 'scoped memory for tpu_custom_call.1']
    %8 = vsyncpa [#allocation3], 0
    %s9 = scalar_lea.sflag [#allocation3], 1
    %10 = vsyncpa %s9, 0
    loop: start=0, step=1, limit=4
    $region2: #{tpu_custom_call.1} parent=1 // loop_pre_header
      _
    $region3: #{tpu_custom_call.1} parent=1 // loop_header
      %s12 = sphi 0, %s16
      %p13 = scmp.ge.s32.totalorder %s12, 4
      %s22 = sphi 0, %s24
      %s25 = sphi 0, %s22
      %s26 = sphi 0, %s25
      %s42 = sphi 0, %s26
      %s46 = sphi 0, %s46
      %s48 = sphi 0, %s46
      %s49 = sphi 0, %s48
      %s63 = sphi 0, %s49
      %s67 = sphi 0, %s67
      %s69 = sphi 0, %s67
      %s70 = sphi 0, %s69
      %s84 = sphi 0, %s70
      %s90 = sphi 0, %s92
      %s93 = sphi 0, %s90
      %s94 = sphi 0, %s93
      %s110 = sphi 0, %s94
    $region4: #{tpu_custom_call.1} parent=1 // loop_header_branch
      %15 = sbr.rel (%p13) target = $region8
    $region5: #{tpu_custom_call.1} parent=1 // loop_body
      %s17 = ssub.s32 %s12, 1
      %s18 = ssub.s32 %s12, 2
      %s19 = sadd.s32 %s12, 1
      %s20 = ssub.s32 %s12, %s19
      %p21 = scmp.eq.s32.totalorder %s20, 0
      %s23 = sadd.s32 %s22, 1
      %s24 = scalar_select %p21, %s22, %s23
      %p27 = pneg %p21
      %p28 = scmp.eq.s32.totalorder %s12, 1
      %p29 = por %p27, %p28
      %p30 = scmp.ne.s32.totalorder %s22, %s25
      %p31 = scmp.eq.s32.totalorder %s12, 0
      %p32 = por %p30, %p31
      %p33 = scmp.ne.s32.totalorder %s22, %s25
      %p34 = scmp.eq.s32.totalorder %s17, 1
      %p35 = por %p33, %p34
      %p36 = scmp.ne.s32.totalorder %s25, %s26
      %p37 = scmp.eq.s32.totalorder %s17, 0
      %p38 = por %p36, %p37
      %p39 = scmp.ne.s32.totalorder %s25, %s26
      %p40 = scmp.eq.s32.totalorder %s18, 1
      %p41 = por %p39, %p40
      %p43 = scmp.ne.s32.totalorder %s26, %s42
      %p44 = scmp.eq.s32.totalorder %s18, 0
      %p45 = por %p43, %p44
      %s47 = sadd.s32 %s46, 1
      %p50 = scmp.eq.s32.totalorder %s12, 1
      %p51 = scmp.ne.s32.totalorder %s46, %s48
      %p52 = scmp.eq.s32.totalorder %s12, 0
      %p53 = por %p51, %p52
      %p54 = scmp.ne.s32.totalorder %s46, %s48
      %p55 = scmp.eq.s32.totalorder %s17, 1
      %p56 = por %p54, %p55
      %p57 = scmp.ne.s32.totalorder %s48, %s49
      %p58 = scmp.eq.s32.totalorder %s17, 0
      %p59 = por %p57, %p58
      %p60 = scmp.ne.s32.totalorder %s48, %s49
      %p61 = scmp.eq.s32.totalorder %s18, 1
      %p62 = por %p60, %p61
      %p64 = scmp.ne.s32.totalorder %s49, %s63
      %p65 = scmp.eq.s32.totalorder %s18, 0
      %p66 = por %p64, %p65
      %s68 = sadd.s32 %s67, 1
      %p71 = scmp.eq.s32.totalorder %s12, 1
      %p72 = scmp.ne.s32.totalorder %s67, %s69
      %p73 = scmp.eq.s32.totalorder %s12, 0
      %p74 = por %p72, %p73
      %p75 = scmp.ne.s32.totalorder %s67, %s69
      %p76 = scmp.eq.s32.totalorder %s17, 1
      %p77 = por %p75, %p76
      %p78 = scmp.ne.s32.totalorder %s69, %s70
      %p79 = scmp.eq.s32.totalorder %s17, 0
      %p80 = por %p78, %p79
      %p81 = scmp.ne.s32.totalorder %s69, %s70
      %p82 = scmp.eq.s32.totalorder %s18, 1
      %p83 = por %p81, %p82
      %p85 = scmp.ne.s32.totalorder %s70, %s84
      %p86 = scmp.eq.s32.totalorder %s18, 0
      %p87 = por %p85, %p86
      %s88 = ssub.s32 %s12, %s19
      %p89 = scmp.eq.s32.totalorder %s88, 0
      %s91 = sadd.s32 %s90, 1
      %s92 = scalar_select %p89, %s90, %s91
      %p95 = pneg %p89
      %p96 = scmp.eq.s32.totalorder %s12, 1
      %p97 = por %p95, %p96
      %p98 = scmp.ne.s32.totalorder %s90, %s93
      %p99 = scmp.eq.s32.totalorder %s12, 0
      %p100 = por %p98, %p99
      %p101 = scmp.ne.s32.totalorder %s90, %s93
      %p102 = scmp.eq.s32.totalorder %s17, 1
      %p103 = por %p101, %p102
      %p104 = scmp.ne.s32.totalorder %s93, %s94
      %p105 = scmp.eq.s32.totalorder %s17, 0
      %p106 = por %p104, %p105
      %p107 = scmp.ne.s32.totalorder %s93, %s94
      %p108 = scmp.eq.s32.totalorder %s18, 1
      %p109 = por %p107, %p108
      %p111 = scmp.ne.s32.totalorder %s94, %s110
      %p112 = scmp.eq.s32.totalorder %s18, 0
      %p113 = por %p111, %p112
      %p114 = scmp.le.s32.totalorder 1, %s12
      %p115 = scmp.lt.s32.totalorder %s12, 3
      %p116 = pnand %p114, %p115
      %p117 = pneg %p116
      // Predicated region
      $region9: #{tpu_custom_call.1} parent=5 // pred_check
        _
      $region10: #{tpu_custom_call.1} parent=5 // pred_check_branch
        %119 = sbr.rel (%p116) target = $region12
      $region11: #{tpu_custom_call.1} parent=5 // pred_region
        %s120 = ssub.s32 %s12, 1
        // Predicated region
        $region13: #{tpu_custom_call.1} parent=11 // pred_check
          %p121 = pneg %p59
        $region14: #{tpu_custom_call.1} parent=11 // pred_check_branch
          %123 = sbr.rel (%p121) target = $region16
        $region15: #{tpu_custom_call.1} parent=11 // pred_region
          _
        $region16: #{tpu_custom_call.1} parent=11 // pred_fallthru
          _
        // Predicated region
        $region17: #{tpu_custom_call.1} parent=11 // pred_check
          %p124 = pneg %p80
        $region18: #{tpu_custom_call.1} parent=11 // pred_check_branch
          %126 = sbr.rel (%p124) target = $region20
        $region19: #{tpu_custom_call.1} parent=11 // pred_region
          _
        $region20: #{tpu_custom_call.1} parent=11 // pred_fallthru
          _
      $region12: #{tpu_custom_call.1} parent=5 // pred_fallthru
        _
      %p127 = scmp.lt.s32.totalorder %s12, 2
      // Predicated region
      $region21: #{tpu_custom_call.1} parent=5 // pred_check
        %p128 = pneg %p127
      $region22: #{tpu_custom_call.1} parent=5 // pred_check_branch
        %130 = sbr.rel (%p128) target = $region24
      $region23: #{tpu_custom_call.1} parent=5 // pred_region
        // Predicated region
        $region25: #{tpu_custom_call.1} parent=23 // pred_check
          %p131 = pneg %p32
        $region26: #{tpu_custom_call.1} parent=23 // pred_check_branch
          %133 = sbr.rel (%p131) target = $region28
        $region27: #{tpu_custom_call.1} parent=23 // pred_region
          %p134 = scmp.lt.s32.totalorder %s12, 1
          %s135 = scalar_select %p134, %s12, 1
          %s136 = smul.addr %s135, 4
          %s137 = scalar_lea.vmem %s0, %s136
        $region28: #{tpu_custom_call.1} parent=23 // pred_fallthru
          _
      $region24: #{tpu_custom_call.1} parent=5 // pred_fallthru
        _
      %p138 = scmp.le.s32.totalorder 1, %s12
      %p139 = scmp.lt.s32.totalorder %s12, 3
      %p140 = pnand %p138, %p139
      %p141 = pneg %p140
      // Predicated region
      $region29: #{tpu_custom_call.1} parent=5 // pred_check
        _
      $region30: #{tpu_custom_call.1} parent=5 // pred_check_branch
        %143 = sbr.rel (%p140) target = $region32
      $region31: #{tpu_custom_call.1} parent=5 // pred_region
        %s144 = ssub.s32 %s12, 1
        %p145 = scmp.lt.s32.totalorder %s17, 1
        %s146 = scalar_select %p145, %s17, 1
        %s147 = smul.addr %s146, 4
        %s148 = scalar_lea.vmem %s0, %s147
        %p149 = pneg %p38
        %p150 = pneg %p35
        %p151 = pneg %p59
        %p152 = pneg %p56
        %p153 = pneg %p80
        %p154 = pneg %p77
        %p155 = pneg %p106
        %p156 = pneg %p103
        %s157 = sand.u32 %s93, 1
        %s158 = scalar_lea.sflag [#allocation3], %s157
        %s159 = sand.u32 %s93, 1
        %s160 = smul.addr %s159, 8
        %s161 = scalar_lea.vmem [#allocation2], %s160
        %p162 = scmp.lt.s32.totalorder %s17, 1
        %s163 = scalar_select %p162, %s17, 1
        %s164 = smul.addr %s163, 4
        %s165 = scalar_lea.vmem %s0, %s164
        %v167 = vld [vmem:[%s165] sm:$0xf]
        %v168 = vld [vmem:[%s1] sm:$0xf]
        %v169 = vld [vmem:[%s1 + $0x4] sm:$0xf]
        %v170 = vld [vmem:[%s1 + $0x8] sm:$0xf]
        %v171 = vld [vmem:[%s1 + $0xc] sm:$0xf]
        %v172 = vld [vmem:[%s1 + $0x10] sm:$0xf]
        %v173 = vld [vmem:[%s1 + $0x14] sm:$0xf]
        %v174 = vld [vmem:[%s1 + $0x18] sm:$0xf]
        %v175 = vld [vmem:[%s1 + $0x1c] sm:$0xf]
        %v176 = vld [vmem:[%s1 + $0x20] sm:$0xf]
        %v177 = vld [vmem:[%s1 + $0x24] sm:$0xf]
        %v178 = vld [vmem:[%s1 + $0x28] sm:$0xf]
        %v179 = vld [vmem:[%s1 + $0x2c] sm:$0xf]
        %v180 = vld [vmem:[%s1 + $0x30] sm:$0xf]
        %v181 = vld [vmem:[%s1 + $0x34] sm:$0xf]
        %v182 = vld [vmem:[%s1 + $0x38] sm:$0xf]
        %v183 = vld [vmem:[%s1 + $0x3c] sm:$0xf]
        %v184 = vld [vmem:[%s2] sm:$0x1]
        %v186 = vlaneseq
        %v187 = vshrl.u32 %v186, 7
        %v188 = vsub.s32 0, %v187
        %v189 = vrot.slane %v184, %v188
        %v207 = vunpack.c.l.b16 %v168
        %v208 = vunpack.c.l.b16 %v169
        %v209 = vunpack.c.l.b16 %v170
        %v210 = vunpack.c.l.b16 %v171
        %v211 = vunpack.c.l.b16 %v172
        %v212 = vunpack.c.l.b16 %v173
        %v213 = vunpack.c.l.b16 %v174
        %v214 = vunpack.c.l.b16 %v175
        %v215 = vunpack.c.l.b16 %v176
        %v216 = vunpack.c.l.b16 %v177
        %v217 = vunpack.c.l.b16 %v178
        %v218 = vunpack.c.l.b16 %v179
        %v219 = vunpack.c.l.b16 %v180
        %v220 = vunpack.c.l.b16 %v181
        %v221 = vunpack.c.l.b16 %v182
        %v222 = vunpack.c.l.b16 %v183
        %v223 = vpack.c.b16 %v208, %v207
        %v224 = vpack.c.b16 %v210, %v209
        %v225 = vpack.c.b16 %v212, %v211
        %v226 = vpack.c.b16 %v214, %v213
        %v227 = vpack.c.b16 %v216, %v215
        %v228 = vpack.c.b16 %v218, %v217
        %v229 = vpack.c.b16 %v220, %v219
        %v230 = vpack.c.b16 %v222, %v221
        %vm231 = vcmask 261120
        %v233 = vsel %vm231, %v167, 0
        %v236 = vsel %vm231, %v223, 0
        %v239 = vsel %vm231, %v224, 0
        %v242 = vsel %vm231, %v225, 0
        %v245 = vsel %vm231, %v226, 0
        %v248 = vsel %vm231, %v227, 0
        %v251 = vsel %vm231, %v228, 0
        %v254 = vsel %vm231, %v229, 0
        %v257 = vsel %vm231, %v230, 0
        %259 = vmatprep.subr.bf16.mxu0 0
        %260 = vmatpush1.bf16.xpose.msra.mxu0 %v236
        %261 = vmatprep.subr.bf16.mxu0 0
        %262 = vmatpush1.bf16.xpose.msra.mxu0 %v239
        %263 = vmatprep.subr.bf16.mxu0 0
        %264 = vmatpush1.bf16.xpose.msra.mxu0 %v242
        %265 = vmatprep.subr.bf16.mxu0 0
        %266 = vmatpush1.bf16.xpose.msra.mxu0 %v245
        %267 = vmatprep.subr.bf16.mxu0 0
        %268 = vmatpush1.bf16.xpose.msra.mxu0 %v248
        %269 = vmatprep.subr.bf16.mxu0 0
        %270 = vmatpush1.bf16.xpose.msra.mxu0 %v251
        %271 = vmatprep.subr.bf16.mxu0 0
        %272 = vmatpush1.bf16.xpose.msra.mxu0 %v254
        %273 = vmatprep.subr.bf16.mxu0 0
        %274 = vmatpush1.bf16.xpose.msra.mxu0 %v257
        %275 = vmatprep.subr.bf16.mxu0 0
        %276 = vmatpush1.bf16.xpose.msra.mxu0 0
        %277 = vmatprep.subr.bf16.mxu0 0
        %278 = vmatpush1.bf16.xpose.msra.mxu0 0
        %279 = vmatprep.subr.bf16.mxu0 0
        %280 = vmatpush1.bf16.xpose.msra.mxu0 0
        %281 = vmatprep.subr.bf16.mxu0 0
        %282 = vmatpush1.bf16.xpose.msra.mxu0 0
        %283 = vmatprep.subr.bf16.mxu0 0
        %284 = vmatpush1.bf16.xpose.msra.mxu0 0
        %285 = vmatprep.subr.bf16.mxu0 0
        %286 = vmatpush1.bf16.xpose.msra.mxu0 0
        %287 = vmatprep.subr.bf16.mxu0 0
        %288 = vmatpush1.bf16.xpose.msra.mxu0 0
        %289 = vmatprep.subr.bf16.mxu0 0
        %290 = vmatpush1.bf16.xpose.msra.mxu0 0
        %291 = vmatprep.mubr.bf16.mxu0 0
        %292 = vmatmul.mubr.bf16.gmra.mrb[0].mxu0 %v233
        %v293 = vpop.f32.mrb[0].mxu0
        %v294 = vadd.f32 %v189, %v293
        %v295 = vpop.f32.mrb[0].mxu0
        %v296 = vpop.f32.mrb[0].mxu0
        %v297 = vpop.f32.mrb[0].mxu0
        %298 = vdwg.mxu0
        %299 = vmax.xlane.f32.xlu0 %v294
        %v300 = vpop.xlane.xlu0 %299
        %v301 = vsub.f32 %v294, %v300
        %v302 = vmul.f32 %v301, 1.442695
        %v303 = vpow.pop %v302
        %304 = vadd.xlane.f32.xlu0 %v303
        %v305 = vpop.xlane.xlu0 %304
        %v306 = vlog2.pop %v305
        %v307 = vmul.f32 %v306, 0.6931472
        %v308 = vsub.f32 %v301, %v307
        %309 = vst [vmem:[%s161] sm:$0xff] %v308
        %s310 = sand.u32 %s93, 1
        %s311 = scalar_lea.sflag [#allocation3], %s310
        %s312 = sand.u32 %s93, 1
        %s313 = smul.addr %s312, 8
        %s314 = scalar_lea.vmem [#allocation2], %s313
        // Predicated region
        $region33: #{tpu_custom_call.1} parent=31 // pred_check
          %p315 = pneg %p103
        $region34: #{tpu_custom_call.1} parent=31 // pred_check_branch
          %317 = sbr.rel (%p315) target = $region36
        $region35: #{tpu_custom_call.1} parent=31 // pred_region
          %s319 = ssub.s32 128, 128
          %320 = vsyncadd %s311, %s319
          %s321 = smul.addr %s17, 128
          %s322 = scalar_lea.hbm %s3, %s321
          %s324 = sshll.u32 %s314, 4
          %s325 = int_to_ptr.vmem [resolvable:$true] %s324
          %327 = dma.vmem_to_hbm [thread:$0]  %s325, 128, %s322, %s311
        $region36: #{tpu_custom_call.1} parent=31 // pred_fallthru
          _
      $region32: #{tpu_custom_call.1} parent=5 // pred_fallthru
        _
      %p328 = scmp.le.s32.totalorder 2, %s12
      // Predicated region
      $region37: #{tpu_custom_call.1} parent=5 // pred_check
        %p329 = pneg %p328
      $region38: #{tpu_custom_call.1} parent=5 // pred_check_branch
        %331 = sbr.rel (%p329) target = $region40
      $region39: #{tpu_custom_call.1} parent=5 // pred_region
        %s332 = ssub.s32 %s12, 2
        // Predicated region
        $region41: #{tpu_custom_call.1} parent=39 // pred_check
          %p333 = pneg %p109
        $region42: #{tpu_custom_call.1} parent=39 // pred_check_branch
          %335 = sbr.rel (%p333) target = $region44
        $region43: #{tpu_custom_call.1} parent=39 // pred_region
          %s336 = sand.u32 %s94, 1
          %s337 = scalar_lea.sflag [#allocation3], %s336
          %s338 = sand.u32 %s94, 1
          %s339 = smul.addr %s338, 8
          %s340 = scalar_lea.vmem [#allocation2], %s339
          %341 = dma.done %s337, 128
        $region44: #{tpu_custom_call.1} parent=39 // pred_fallthru
          _
      $region40: #{tpu_custom_call.1} parent=5 // pred_fallthru
        _
    $region6: #{tpu_custom_call.1} parent=1 // loop_footer
      %s16 = sadd.s32 1, %s12
    $region7: #{tpu_custom_call.1} parent=1 // loop_footer_branch
      %11 = sbr.rel target = $region3
    $region8: #{tpu_custom_call.1} parent=1 // loop_exit
      _
    %342 = vsyncpa [#allocation3], 1
    %s343 = scalar_lea.sflag [#allocation3], 1
    %344 = vsyncpa %s343, 1

</llo_original>
